<compile_context>
chip_gen: v6e
topology: v6e:2x2x1
jax: 0.10.0
libtpu: 0.0.40
codegen_flags: <defaults>
</compile_context>

<pallas_src>
import jax
import jax.numpy as jnp
from jax.experimental import pallas as pl
from jax.experimental.pallas import tpu as pltpu


def _round_up(x, m):
    return ((x + m - 1) // m) * m


def _device_vmem_profile():
    """Returns (vmem_limit_bytes, tile_budget_bytes, num_tensorcores)."""
    try:
        kind = jax.devices()[0].device_kind.lower()
    except Exception:  # pragma: no cover - e.g. interpret mode
        kind = ""
    is_v7x = ("v7" in kind) or ("7x" in kind)
    if is_v7x:
        limit = 48 * 1024 * 1024      # 64 MiB physical per TC on v7x
        cores = 2
    else:
        limit = 96 * 1024 * 1024      # 128 MiB physical on v5e/v6e
        cores = 1
    budget = limit - 8 * 1024 * 1024  # headroom for compiler internal scratch
    return limit, budget, cores


def _auto_tile_m(M, D, H, A_pad, x_bytes, cmp_bytes, out_bytes, w_bytes, sub,
                 budget, num_cores):
    # Resident weights/biases (charged at 2x for default double buffering;
    # negligible at H=128 so pl.Buffered(1) is not worth the risk).
    weight_bytes = 2 * ((D * H + H * A_pad) * w_bytes + (H + A_pad) * 4)
    # Per-row VMEM: double-buffered x tile + double-buffered hidden/logits
    # output tiles + single-buffered f32 in-kernel intermediates (h, logits)
    # + the in-kernel cast of x when compute dtype differs from input dtype.
    per_row = (2 * D * x_bytes
               + 2 * (H + A_pad) * out_bytes
               + (H + A_pad) * 4
               + (D * cmp_bytes if cmp_bytes != x_bytes else 0))
    rows = max(sub, (budget - weight_bytes) // max(per_row, 1))
    tile = min(8192, rows, _round_up(M, sub))
    if num_cores > 1:
        # v7x megacore: keep the parallel grid at >= num_cores steps so both
        # TensorCores get work.
        tile = min(tile, _round_up(pl.cdiv(M, num_cores), sub))
    return max(sub, (tile // sub) * sub)


def _mlp_kernel(x_ref, w1_ref, b1_ref, w2_ref, b2_ref, logits_ref, hid_ref):
    # Cast x to the compute dtype in-kernel (VPU slack; avoids a wrapper-side
    # HBM pass when compute dtype != input dtype).
    x = x_ref[...].astype(w1_ref.dtype)

    # fc1 + ReLU: MXU matmul with f32 accumulation; bias/ReLU on f32 (VPU).
    h = jnp.dot(x, w1_ref[...], preferred_element_type=jnp.float32)
    h = jnp.maximum(h + b1_ref[...], 0.0)          # (TM, H) + (1, H) broadcast
    hid_ref[...] = h.astype(hid_ref.dtype)

    # fc2: lane-dense (A padded to multiple of 128) MXU matmul, f32 accumulate.
    logits = jnp.dot(h.astype(w2_ref.dtype), w2_ref[...],
                     preferred_element_type=jnp.float32)
    logits_ref[...] = (logits + b2_ref[...]).astype(logits_ref.dtype)


def dialog_acts_predictor_forward(inputs, input_lengths, params, *,
                                  tile_m=None, compute_dtype=None,
                                  out_dtype=None, trim_logits=True):
    """inputs: (B, S, D). Returns (logits (B,S,A), hidden (B,S,H)).

    compute_dtype: dtype of the MXU operands (accumulation is always f32).
    out_dtype:     dtype of the stored hidden/logits (bf16 recommended on
                   v6e/v7x; defaults to inputs.dtype).
    trim_logits:   slice the lane-padded logits back to A columns (module
                   semantics). Set False to skip that extra HBM pass if the
                   consumer tolerates zero-padded logits.
    """
    del input_lengths  # not used in the PyTorch forward
    w1 = params["w1"]
    b1 = params["b1"].astype(jnp.float32)
    w2 = params["w2"]
    b2 = params["b2"].astype(jnp.float32)

    B, S, D = inputs.shape
    H = w1.shape[1]
    A = w2.shape[1]
    M = B * S

    in_dtype = jnp.dtype(inputs.dtype)
    compute_dtype = in_dtype if compute_dtype is None else jnp.dtype(compute_dtype)
    out_dtype = in_dtype if out_dtype is None else jnp.dtype(out_dtype)
    x_bytes = in_dtype.itemsize
    cmp_bytes = compute_dtype.itemsize
    out_bytes = out_dtype.itemsize

    # --- lane-dense logits: pad A up to a multiple of 128 (zero columns) ---
    A_pad = _round_up(A, 128)
    if A_pad != A:
        w2 = jnp.pad(w2, ((0, 0), (0, A_pad - A)))
        b2 = jnp.pad(b2, ((0, 0), (0, A_pad - A)))

    # Weights to compute dtype (tiny, one-time). x stays in its input dtype;
    # it is cast inside the kernel.
    w1 = w1.astype(compute_dtype)
    w2 = w2.astype(compute_dtype)
    x2d = inputs.reshape(M, D)

    # --- row tiling: big VMEM-filling tiles, ragged last block masked ---
    vmem_limit, budget, num_cores = _device_vmem_profile()
    sub = 16 if min(x_bytes, cmp_bytes, out_bytes) < 4 else 8
    if tile_m is None:
        tile_m = _auto_tile_m(M, D, H, A_pad, x_bytes, cmp_bytes, out_bytes,
                              cmp_bytes, sub, budget, num_cores)
    else:
        tile_m = max(sub, _round_up(tile_m, sub))

    grid = (pl.cdiv(M, tile_m),)

    cost = pl.CostEstimate(
        flops=2 * M * (D * H + H * A_pad),
        transcendentals=0,
        bytes_accessed=(M * D * x_bytes
                        + (D * H + H * A_pad) * cmp_bytes
                        + (H + A_pad) * 4
                        + M * (H + A_pad) * out_bytes),
    )

    logits2d, hid2d = pl.pallas_call(
        _mlp_kernel,
        out_shape=(
            jax.ShapeDtypeStruct((M, A_pad), out_dtype),
            jax.ShapeDtypeStruct((M, H), out_dtype),
        ),
        grid_spec=pltpu.PrefetchScalarGridSpec(
            num_scalar_prefetch=0,
            grid=grid,
            in_specs=[
                pl.BlockSpec((tile_m, D), lambda i: (i, 0)),    # x tile
                pl.BlockSpec((D, H), lambda i: (0, 0)),         # W1 (resident)
                pl.BlockSpec((1, H), lambda i: (0, 0)),         # b1 (f32)
                pl.BlockSpec((H, A_pad), lambda i: (0, 0)),     # W2 (resident)
                pl.BlockSpec((1, A_pad), lambda i: (0, 0)),     # b2 (f32)
            ],
            out_specs=[
                pl.BlockSpec((tile_m, A_pad), lambda i: (i, 0)),  # logits tile
                pl.BlockSpec((tile_m, H), lambda i: (i, 0)),      # hidden tile
            ],
        ),
        compiler_params=pltpu.CompilerParams(
            dimension_semantics=("parallel",),
            vmem_limit_bytes=int(vmem_limit),
        ),
        cost_estimate=cost,
    )(x2d, w1, b1, w2, b2)

    hidden = hid2d.reshape(B, S, H)
    if trim_logits:
        logits = logits2d[:, :A].reshape(B, S, A)
    else:
        logits = logits2d.reshape(B, S, A_pad)
    return logits, hidden


def init_params(key, input_dim, num_dialog_acts, hidden_dim=128):
    """Deterministic synthetic init (PyTorch Linear-style uniform bounds)."""
    k1, k2, k3, k4 = jax.random.split(key, 4)
    lim1 = 1.0 / (input_dim ** 0.5)
    lim2 = 1.0 / (hidden_dim ** 0.5)
    # stored pre-transposed: (in, out)
    w1 = jax.random.uniform(k1, (input_dim, hidden_dim), jnp.float32, -lim1, lim1)
    b1 = jax.random.uniform(k2, (1, hidden_dim), jnp.float32, -lim1, lim1)
    w2 = jax.random.uniform(k3, (hidden_dim, num_dialog_acts), jnp.float32, -lim2, lim2)
    b2 = jax.random.uniform(k4, (1, num_dialog_acts), jnp.float32, -lim2, lim2)
    return {"w1": w1, "b1": b1, "w2": w2, "b2": b2}


if __name__ == "__main__":
    # Small shapes consistent with the module: (batch, seq, input_dim).
    # seq=7 makes M=14 deliberately NOT a multiple of the tile so the ragged
    # last-block masking path (no wrapper pad/slice) is exercised.
    batch, seq, input_dim = 2, 7, 32
    hidden_dim, num_dialog_acts = 128, 16

    key = jax.random.PRNGKey(0)
    k_in, k_par = jax.random.split(key)
    inputs = jax.random.normal(k_in, (batch, seq, input_dim), jnp.float32)
    input_lengths = jnp.full((batch,), seq, jnp.int32)  # unused in forward
    params = init_params(k_par, input_dim, num_dialog_acts, hidden_dim)

    # Reference in plain JAX
    ref_h = jnp.maximum(inputs @ params["w1"] + params["b1"][0], 0.0)
    ref_logits = ref_h @ params["w2"] + params["b2"][0]

    # 1) Default auto-tiled f32 path.
    logits, hidden = dialog_acts_predictor_forward(inputs, input_lengths, params)
    jax.block_until_ready((logits, hidden))
    assert logits.shape == (batch, seq, num_dialog_acts)
    assert hidden.shape == (batch, seq, hidden_dim)
    assert jnp.allclose(hidden, ref_h, atol=1e-5, rtol=1e-5)
    assert jnp.allclose(logits, ref_logits, atol=1e-5, rtol=1e-5)

    # 2) Explicit small tile: multi-step grid + ragged last block (14 % 8 != 0).
    logits_t, hidden_t = dialog_acts_predictor_forward(
        inputs, input_lengths, params, tile_m=8)
    jax.block_until_ready((logits_t, hidden_t))
    assert jnp.allclose(hidden_t, ref_h, atol=1e-5, rtol=1e-5)
    assert jnp.allclose(logits_t, ref_logits, atol=1e-5, rtol=1e-5)

    # 3) bf16 compute + bf16 outputs (memory-bound win on v6e/v7x); f32 accumulate.
    logits_bf, hidden_bf = dialog_acts_predictor_forward(
        inputs, input_lengths, params,
        compute_dtype=jnp.bfloat16, out_dtype=jnp.bfloat16)
    jax.block_until_ready((logits_bf, hidden_bf))
    assert jnp.allclose(hidden_bf.astype(jnp.float32), ref_h, atol=1e-1, rtol=1e-1)
    assert jnp.allclose(logits_bf.astype(jnp.float32), ref_logits, atol=1e-1, rtol=1e-1)

    # TODO(synk): get_loss (BCEWithLogitsLoss) is training-only, not part of forward.
    print("KERNEL_OK")
</pallas_src>

<mosaic_0001>
module attributes {stable_mosaic.version = 11 : i64} {
  func.func @_mlp_kernel(%arg0: i32, %arg1: memref<16x32xf32, #tpu.memory_space<vmem>>, %arg2: memref<32x128xf32, #tpu.memory_space<vmem>>, %arg3: memref<1x128xf32, #tpu.memory_space<vmem>>, %arg4: memref<128x128xf32, #tpu.memory_space<vmem>>, %arg5: memref<1x128xf32, #tpu.memory_space<vmem>>, %arg6: memref<16x128xf32, #tpu.memory_space<vmem>>, %arg7: memref<16x128xf32, #tpu.memory_space<vmem>>) attributes {dimension_semantics = [#tpu.dimension_semantics<parallel>], iteration_bounds = array<i64: 1>, scalar_prefetch = 0 : i64, scratch_operands = 0 : i64, tpu.core_type = #tpu.core_type<tc>, window_params = [{transform_indices = @transform_0, window_bounds = array<i64: 16, 32>}, {pipeline_mode = #tpu.pipeline_mode<synchronous>, transform_indices = @transform_1, window_bounds = array<i64: 32, 128>}, {pipeline_mode = #tpu.pipeline_mode<synchronous>, transform_indices = @transform_2, window_bounds = array<i64: 1, 128>}, {pipeline_mode = #tpu.pipeline_mode<synchronous>, transform_indices = @transform_3, window_bounds = array<i64: 128, 128>}, {pipeline_mode = #tpu.pipeline_mode<synchronous>, transform_indices = @transform_4, window_bounds = array<i64: 1, 128>}, {transform_indices = @transform_5, window_bounds = array<i64: 16, 128>}, {transform_indices = @transform_6, window_bounds = array<i64: 16, 128>}]} {
    %c0 = arith.constant 0 : index
    %c0_0 = arith.constant 0 : index
    %0 = vector.load %arg1[%c0, %c0_0] : memref<16x32xf32, #tpu.memory_space<vmem>>, vector<16x32xf32>
    %c0_1 = arith.constant 0 : index
    %c0_2 = arith.constant 0 : index
    %1 = vector.load %arg2[%c0_1, %c0_2] : memref<32x128xf32, #tpu.memory_space<vmem>>, vector<32x128xf32>
    %cst = arith.constant dense<0.000000e+00> : vector<16x128xf32>
    %2 = tpu.matmul %0, %1, %cst {dimension_numbers = #tpu.dot_dimension_numbers<[1], [0], [0], [1], [0, 0, 1, 1], [], []>} : vector<16x32xf32>, vector<32x128xf32>, vector<16x128xf32> -> vector<16x128xf32>
    %c0_3 = arith.constant 0 : index
    %c0_4 = arith.constant 0 : index
    %3 = vector.load %arg3[%c0_3, %c0_4] : memref<1x128xf32, #tpu.memory_space<vmem>>, vector<1x128xf32>
    %4 = vector.broadcast %3 : vector<1x128xf32> to vector<16x128xf32>
    %5 = arith.addf %2, %4 : vector<16x128xf32>
    %cst_5 = arith.constant 0.000000e+00 : f32
    %6 = vector.broadcast %cst_5 : f32 to vector<16x128xf32>
    %7 = arith.maximumf %5, %6 : vector<16x128xf32>
    %c0_6 = arith.constant 0 : index
    %c0_7 = arith.constant 0 : index
    %8 = vector.load %arg7[%c0_6, %c0_7] : memref<16x128xf32, #tpu.memory_space<vmem>>, vector<16x128xf32>
    tpu.vector_store %arg7[%c0_6, %c0_7], %7 {strides = array<i32>} : memref<16x128xf32, #tpu.memory_space<vmem>>, vector<16x128xf32>,
    %c0_8 = arith.constant 0 : index
    %c0_9 = arith.constant 0 : index
    %9 = vector.load %arg4[%c0_8, %c0_9] : memref<128x128xf32, #tpu.memory_space<vmem>>, vector<128x128xf32>
    %cst_10 = arith.constant dense<0.000000e+00> : vector<16x128xf32>
    %10 = tpu.matmul %7, %9, %cst_10 {dimension_numbers = #tpu.dot_dimension_numbers<[1], [0], [0], [1], [0, 0, 1, 1], [], []>} : vector<16x128xf32>, vector<128x128xf32>, vector<16x128xf32> -> vector<16x128xf32>
    %c0_11 = arith.constant 0 : index
    %c0_12 = arith.constant 0 : index
    %11 = vector.load %arg5[%c0_11, %c0_12] : memref<1x128xf32, #tpu.memory_space<vmem>>, vector<1x128xf32>
    %12 = vector.broadcast %11 : vector<1x128xf32> to vector<16x128xf32>
    %13 = arith.addf %10, %12 : vector<16x128xf32>
    %c0_13 = arith.constant 0 : index
    %c0_14 = arith.constant 0 : index
    %14 = vector.load %arg6[%c0_13, %c0_14] : memref<16x128xf32, #tpu.memory_space<vmem>>, vector<16x128xf32>
    tpu.vector_store %arg6[%c0_13, %c0_14], %13 {strides = array<i32>} : memref<16x128xf32, #tpu.memory_space<vmem>>, vector<16x128xf32>,
    return
  }
  func.func @transform_0(%arg0: i32) -> (i32, i32) {
    %c0_i32 = arith.constant 0 : i32
    %c0_i32_0 = arith.constant 0 : i32
    return %arg0, %c0_i32 : i32, i32
  }
  func.func @transform_1(%arg0: i32) -> (i32, i32) {
    %c0_i32 = arith.constant 0 : i32
    %c0_i32_0 = arith.constant 0 : i32
    %c0_i32_1 = arith.constant 0 : i32
    return %c0_i32, %c0_i32_0 : i32, i32
  }
  func.func @transform_2(%arg0: i32) -> (i32, i32) {
    %c0_i32 = arith.constant 0 : i32
    %c0_i32_0 = arith.constant 0 : i32
    %c0_i32_1 = arith.constant 0 : i32
    return %c0_i32, %c0_i32_0 : i32, i32
  }
  func.func @transform_3(%arg0: i32) -> (i32, i32) {
    %c0_i32 = arith.constant 0 : i32
    %c0_i32_0 = arith.constant 0 : i32
    %c0_i32_1 = arith.constant 0 : i32
    return %c0_i32, %c0_i32_0 : i32, i32
  }
  func.func @transform_4(%arg0: i32) -> (i32, i32) {
    %c0_i32 = arith.constant 0 : i32
    %c0_i32_0 = arith.constant 0 : i32
    %c0_i32_1 = arith.constant 0 : i32
    return %c0_i32, %c0_i32_0 : i32, i32
  }
  func.func @transform_5(%arg0: i32) -> (i32, i32) {
    %c0_i32 = arith.constant 0 : i32
    %c0_i32_0 = arith.constant 0 : i32
    return %arg0, %c0_i32 : i32, i32
  }
  func.func @transform_6(%arg0: i32) -> (i32, i32) {
    %c0_i32 = arith.constant 0 : i32
    %c0_i32_0 = arith.constant 0 : i32
    return %arg0, %c0_i32 : i32, i32
  }
}

</mosaic_0001>

<llo_original>
// kernel: tpu_custom_call.1
$region0: #{tpu_custom_call.1}
  #allocation0 [shape = 'u32[]', space=smem, size = 0x4, offset = 0x4, fixed_abs, tag = 'smem constant byte address 0x4 - core index']
  #allocation1 [shape = 'u32[144,128]{1,0:T(1,128)}', space=vmem, size = 0x12000, scoped, tag = 'internal scratch']
  %s0 = inlined_call_operand.hbm [shape: f32[14,32], index: 0, kind: input, shape index: {}]
  %s1 = inlined_call_operand.hbm [shape: f32[32,128], index: 1, kind: input, shape index: {}]
  %s2 = inlined_call_operand.vmem [shape: f32[1,128], index: 2, kind: input, shape index: {}]
  %s3 = inlined_call_operand.hbm [shape: f32[128,128], index: 3, kind: input, shape index: {}]
  %s4 = inlined_call_operand.vmem [shape: f32[1,128], index: 4, kind: input, shape index: {}]
  %s5 = inlined_call_operand.hbm [shape: f32[14,128], index: 5, kind: output, shape index: {0}]
  %s6 = inlined_call_operand.hbm [shape: f32[14,128], index: 6, kind: output, shape index: {1}]
  %7 = xla_tuple %s5, %s6
  %s8 = sld [smem:[#allocation0]]
  $region50: #{tpu_custom_call.1} parent=0
    _
  %s10 = ssub.s32 1, %s8
  %s11 = scalar_select 0, %s10, %s8
  $region1: #{tpu_custom_call.1} parent=0
    #allocation2 [shape = 'u8[8192]{0}', space=vmem, size = 0x2000, scoped, tag = 'input window, operand 0, single buffered']
    #allocation3 [shape = 's32[1]{0}', space=sflag, size = 0x4, scoped, tag = 'scoped memory for tpu_custom_call.1']
    #allocation4 [shape = 's32[1]{0}', space=sflag, size = 0x4, scoped, tag = 'scoped memory for tpu_custom_call.1']
    #allocation5 [shape = 'u8[16384]{0}', space=vmem, size = 0x4000, scoped, tag = 'input window, operand 1, single buffered']
    #allocation6 [shape = 's32[1]{0}', space=sflag, size = 0x4, scoped, tag = 'scoped memory for tpu_custom_call.1']
    #allocation7 [shape = 'u8[65536]{0}', space=vmem, size = 0x10000, scoped, tag = 'input window, operand 3, single buffered']
    #allocation8 [shape = 'u8[8192]{0}', space=vmem, size = 0x2000, scoped, tag = 'output window, operand 0, single buffered']
    #allocation9 [shape = 'u8[8192]{0}', space=vmem, size = 0x2000, scoped, tag = 'output window, operand 1, single buffered']
    #allocation10 [shape = 's32[1]{0}', space=sflag, size = 0x4, scoped, tag = 'scoped memory for tpu_custom_call.1']
    %12 = vsyncpa [#allocation3], 0
    %13 = vsyncpa [#allocation6], 0
    %14 = vsyncpa [#allocation4], 0
    %15 = vsyncpa [#allocation10], 0
    // Predicated region
    $region2: #{tpu_custom_call.1} parent=1 // pred_check
      _
    $region3: #{tpu_custom_call.1} parent=1 // pred_check_branch
      %17 = sbr.rel (0) target = $region5
    $region4: #{tpu_custom_call.1} parent=1 // pred_region
      %s19 = ssub.s32 256, 256
      %20 = vsyncadd [#allocation3], %s19
      %s21 = sshll.u32 [#allocation2], 4
      %s22 = int_to_ptr.vmem [resolvable:$true] %s21
      %27 = dma.hbm_to_vmem [thread:$0]  %s0, 256, %s22, [#allocation3], 128, 128, 8
    $region5: #{tpu_custom_call.1} parent=1 // pred_fallthru
      _
    // Predicated region
    $region6: #{tpu_custom_call.1} parent=1 // pred_check
      _
    $region7: #{tpu_custom_call.1} parent=1 // pred_check_branch
      %29 = sbr.rel (0) target = $region9
    $region8: #{tpu_custom_call.1} parent=1 // pred_region
      %s31 = ssub.s32 512, 512
      %32 = vsyncadd [#allocation6], %s31
      %s33 = sshll.u32 [#allocation5], 4
      %s34 = int_to_ptr.vmem [resolvable:$true] %s33
      %39 = dma.hbm_to_vmem [thread:$0]  %s1, 512, %s34, [#allocation6], 128, 128, 8
    $region9: #{tpu_custom_call.1} parent=1 // pred_fallthru
      _
    // Predicated region
    $region10: #{tpu_custom_call.1} parent=1 // pred_check
      _
    $region11: #{tpu_custom_call.1} parent=1 // pred_check_branch
      %41 = sbr.rel (0) target = $region13
    $region12: #{tpu_custom_call.1} parent=1 // pred_region
      _
    $region13: #{tpu_custom_call.1} parent=1 // pred_fallthru
      _
    // Predicated region
    $region14: #{tpu_custom_call.1} parent=1 // pred_check
      _
    $region15: #{tpu_custom_call.1} parent=1 // pred_check_branch
      %43 = sbr.rel (0) target = $region17
    $region16: #{tpu_custom_call.1} parent=1 // pred_region
      %s45 = ssub.s32 2048, 2048
      %46 = vsyncadd [#allocation6], %s45
      %s47 = sshll.u32 [#allocation7], 4
      %s48 = int_to_ptr.vmem [resolvable:$true] %s47
      %53 = dma.hbm_to_vmem [thread:$0]  %s3, 2048, %s48, [#allocation6], 128, 128, 8
    $region17: #{tpu_custom_call.1} parent=1 // pred_fallthru
      _
    // Predicated region
    $region18: #{tpu_custom_call.1} parent=1 // pred_check
      _
    $region19: #{tpu_custom_call.1} parent=1 // pred_check_branch
      %55 = sbr.rel (0) target = $region21
    $region20: #{tpu_custom_call.1} parent=1 // pred_region
      _
    $region21: #{tpu_custom_call.1} parent=1 // pred_fallthru
      _
    // Predicated region
    $region22: #{tpu_custom_call.1} parent=1 // pred_check
      _
    $region23: #{tpu_custom_call.1} parent=1 // pred_check_branch
      %57 = sbr.rel (0) target = $region25
    $region24: #{tpu_custom_call.1} parent=1 // pred_region
      %58 = dma.done [#allocation3], 256
    $region25: #{tpu_custom_call.1} parent=1 // pred_fallthru
      _
    // Predicated region
    $region26: #{tpu_custom_call.1} parent=1 // pred_check
      _
    $region27: #{tpu_custom_call.1} parent=1 // pred_check_branch
      %60 = sbr.rel (0) target = $region29
    $region28: #{tpu_custom_call.1} parent=1 // pred_region
      %61 = dma.done [#allocation6], 512
    $region29: #{tpu_custom_call.1} parent=1 // pred_fallthru
      _
    // Predicated region
    $region30: #{tpu_custom_call.1} parent=1 // pred_check
      _
    $region31: #{tpu_custom_call.1} parent=1 // pred_check_branch
      %63 = sbr.rel (0) target = $region33
    $region32: #{tpu_custom_call.1} parent=1 // pred_region
      %64 = dma.done [#allocation6], 2048
    $region33: #{tpu_custom_call.1} parent=1 // pred_fallthru
      _
    %v65 = vld [vmem:[#allocation2] sm:$0xff]
    %v66 = vld [vmem:[#allocation2 + $0x8] sm:$0xff]
    %v67 = vld [vmem:[#allocation5] sm:$0xff]
    %v68 = vld [vmem:[#allocation5 + $0x8] sm:$0xff]
    %v69 = vld [vmem:[#allocation5 + $0x10] sm:$0xff]
    %v70 = vld [vmem:[#allocation5 + $0x18] sm:$0xff]
    %v71 = vld [vmem:[%s2] sm:$0x1]
    %v73 = vlaneseq
    %v74 = vshrl.u32 %v73, 7
    %v75 = vsub.s32 0, %v74
    %v76 = vrot.slane %v71, %v75
    %vm78 = vcmask 261120
    %v80 = vsel %vm78, %v65, 0
    %v83 = vsel %vm78, %v66, 0
    %85 = vmatprep.subr.mxu0 0.0
    %86 = vmatpush1.msra.mxu0 0.0
    %87 = vmatprep.subr.mxu0 0.0
    %88 = vmatpush1.msra.mxu0 0.0
    %89 = vmatprep.subr.mxu0 0.0
    %90 = vmatpush1.msra.mxu0 0.0
    %91 = vmatprep.subr.mxu0 0.0
    %92 = vmatpush1.msra.mxu0 0.0
    %93 = vmatprep.subr.mxu0 0.0
    %94 = vmatpush1.msra.mxu0 0.0
    %95 = vmatprep.subr.mxu0 0.0
    %96 = vmatpush1.msra.mxu0 0.0
    %97 = vmatprep.subr.mxu0 0.0
    %98 = vmatpush1.msra.mxu0 0.0
    %99 = vmatprep.subr.mxu0 0.0
    %100 = vmatpush1.msra.mxu0 0.0
    %101 = vmatprep.subr.mxu0 0.0
    %102 = vmatpush1.msra.mxu0 0.0
    %103 = vmatprep.subr.mxu0 0.0
    %104 = vmatpush1.msra.mxu0 0.0
    %105 = vmatprep.subr.mxu0 0.0
    %106 = vmatpush1.msra.mxu0 0.0
    %107 = vmatprep.subr.mxu0 0.0
    %108 = vmatpush1.msra.mxu0 0.0
    %109 = vmatprep.subr.mxu0 0.0
    %110 = vmatpush1.msra.mxu0 %v70
    %111 = vmatprep.subr.mxu0 0.0
    %112 = vmatpush1.msra.mxu0 %v69
    %113 = vmatprep.subr.mxu0 0.0
    %114 = vmatpush1.msra.mxu0 %v68
    %115 = vmatprep.subr.mxu0 0.0
    %116 = vmatpush1.msra.mxu0 %v67
    %117 = vmatprep.subr.mxu0 0.0
    %118 = vmatpush2.msra.mxu0 0.0
    %119 = vmatprep.subr.mxu0 0.0
    %120 = vmatpush2.msra.mxu0 0.0
    %121 = vmatprep.subr.mxu0 0.0
    %122 = vmatpush2.msra.mxu0 0.0
    %123 = vmatprep.subr.mxu0 0.0
    %124 = vmatpush2.msra.mxu0 0.0
    %125 = vmatprep.subr.mxu0 0.0
    %126 = vmatpush2.msra.mxu0 0.0
    %127 = vmatprep.subr.mxu0 0.0
    %128 = vmatpush2.msra.mxu0 0.0
    %129 = vmatprep.subr.mxu0 0.0
    %130 = vmatpush2.msra.mxu0 0.0
    %131 = vmatprep.subr.mxu0 0.0
    %132 = vmatpush2.msra.mxu0 0.0
    %133 = vmatprep.subr.mxu0 0.0
    %134 = vmatpush2.msra.mxu0 0.0
    %135 = vmatprep.subr.mxu0 0.0
    %136 = vmatpush2.msra.mxu0 0.0
    %137 = vmatprep.subr.mxu0 0.0
    %138 = vmatpush2.msra.mxu0 0.0
    %139 = vmatprep.subr.mxu0 0.0
    %140 = vmatpush2.msra.mxu0 0.0
    %141 = vmatprep.subr.mxu0 0.0
    %142 = vmatpush2.msra.mxu0 0.0
    %143 = vmatprep.subr.mxu0 0.0
    %144 = vmatpush2.msra.mxu0 0.0
    %145 = vmatprep.subr.mxu0 0.0
    %146 = vmatpush2.msra.mxu0 0.0
    %147 = vmatprep.subr.mxu0 0.0
    %148 = vmatpush2.msra.mxu0 0.0
    %149 = vmatprep.mubr.f32.mxu0 0.0
    %150 = vmatmul.mubr.f32.gmra.mxu0 %v80
    %v151 = vpop.f32.mrf.mxu0
    %v152 = vadd.f32 %v76, %v151
    %v153 = vpop.f32.mrf.mxu0
    %154 = vmatprep.mubr.f32.mxu0 0.0
    %155 = vmatmul.mubr.f32.gmra.mxu0 %v83
    %v156 = vpop.f32.mrf.mxu0
    %v157 = vadd.f32 %v76, %v156
    %v158 = vpop.f32.mrf.mxu0
    %159 = vdwg.mxu0
    %v160 = vmax.f32 %v152, 0.0
    %v161 = vmax.f32 %v157, 0.0
    %162 = vst [vmem:[#allocation9] sm:$0xff] %v160
    %163 = vst [vmem:[#allocation9 + $0x8] sm:$0xff] %v161
    %v164 = vld [vmem:[#allocation7] sm:$0xff]
    %v165 = vld [vmem:[#allocation7 + $0x8] sm:$0xff]
    %v166 = vld [vmem:[#allocation7 + $0x10] sm:$0xff]
    %v167 = vld [vmem:[#allocation7 + $0x18] sm:$0xff]
    %v168 = vld [vmem:[#allocation7 + $0x20] sm:$0xff]
    %v169 = vld [vmem:[#allocation7 + $0x28] sm:$0xff]
    %v170 = vld [vmem:[#allocation7 + $0x30] sm:$0xff]
    %v171 = vld [vmem:[#allocation7 + $0x38] sm:$0xff]
    %v172 = vld [vmem:[#allocation7 + $0x40] sm:$0xff]
    %v173 = vld [vmem:[#allocation7 + $0x48] sm:$0xff]
    %v174 = vld [vmem:[#allocation7 + $0x50] sm:$0xff]
    %v175 = vld [vmem:[#allocation7 + $0x58] sm:$0xff]
    %v176 = vld [vmem:[#allocation7 + $0x60] sm:$0xff]
    %v177 = vld [vmem:[#allocation7 + $0x68] sm:$0xff]
    %v178 = vld [vmem:[#allocation7 + $0x70] sm:$0xff]
    %v179 = vld [vmem:[#allocation7 + $0x78] sm:$0xff]
    %v180 = vld [vmem:[%s4] sm:$0x1]
    %v182 = vlaneseq
    %v183 = vshrl.u32 %v182, 7
    %v184 = vsub.s32 0, %v183
    %v185 = vrot.slane %v180, %v184
    %187 = vmatprep.subr.mxu0 0.0
    %188 = vmatpush1.msra.mxu0 %v179
    %189 = vmatprep.subr.mxu0 0.0
    %190 = vmatpush1.msra.mxu0 %v178
    %191 = vmatprep.subr.mxu0 0.0
    %192 = vmatpush1.msra.mxu0 %v177
    %193 = vmatprep.subr.mxu0 0.0
    %194 = vmatpush1.msra.mxu0 %v176
    %195 = vmatprep.subr.mxu0 0.0
    %196 = vmatpush1.msra.mxu0 %v175
    %197 = vmatprep.subr.mxu0 0.0
    %198 = vmatpush1.msra.mxu0 %v174
    %199 = vmatprep.subr.mxu0 0.0
    %200 = vmatpush1.msra.mxu0 %v173
    %201 = vmatprep.subr.mxu0 0.0
    %202 = vmatpush1.msra.mxu0 %v172
    %203 = vmatprep.subr.mxu0 0.0
    %204 = vmatpush1.msra.mxu0 %v171
    %205 = vmatprep.subr.mxu0 0.0
    %206 = vmatpush1.msra.mxu0 %v170
    %207 = vmatprep.subr.mxu0 0.0
    %208 = vmatpush1.msra.mxu0 %v169
    %209 = vmatprep.subr.mxu0 0.0
    %210 = vmatpush1.msra.mxu0 %v168
    %211 = vmatprep.subr.mxu0 0.0
    %212 = vmatpush1.msra.mxu0 %v167
    %213 = vmatprep.subr.mxu0 0.0
    %214 = vmatpush1.msra.mxu0 %v166
    %215 = vmatprep.subr.mxu0 0.0
    %216 = vmatpush1.msra.mxu0 %v165
    %217 = vmatprep.subr.mxu0 0.0
    %218 = vmatpush1.msra.mxu0 %v164
    %219 = vmatprep.subr.mxu0 0.0
    %220 = vmatpush2.msra.mxu0 0.0
    %221 = vmatprep.subr.mxu0 0.0
    %222 = vmatpush2.msra.mxu0 0.0
    %223 = vmatprep.subr.mxu0 0.0
    %224 = vmatpush2.msra.mxu0 0.0
    %225 = vmatprep.subr.mxu0 0.0
    %226 = vmatpush2.msra.mxu0 0.0
    %227 = vmatprep.subr.mxu0 0.0
    %228 = vmatpush2.msra.mxu0 0.0
    %229 = vmatprep.subr.mxu0 0.0
    %230 = vmatpush2.msra.mxu0 0.0
    %231 = vmatprep.subr.mxu0 0.0
    %232 = vmatpush2.msra.mxu0 0.0
    %233 = vmatprep.subr.mxu0 0.0
    %234 = vmatpush2.msra.mxu0 0.0
    %235 = vmatprep.subr.mxu0 0.0
    %236 = vmatpush2.msra.mxu0 0.0
    %237 = vmatprep.subr.mxu0 0.0
    %238 = vmatpush2.msra.mxu0 0.0
    %239 = vmatprep.subr.mxu0 0.0
    %240 = vmatpush2.msra.mxu0 0.0
    %241 = vmatprep.subr.mxu0 0.0
    %242 = vmatpush2.msra.mxu0 0.0
    %243 = vmatprep.subr.mxu0 0.0
    %244 = vmatpush2.msra.mxu0 0.0
    %245 = vmatprep.subr.mxu0 0.0
    %246 = vmatpush2.msra.mxu0 0.0
    %247 = vmatprep.subr.mxu0 0.0
    %248 = vmatpush2.msra.mxu0 0.0
    %249 = vmatprep.subr.mxu0 0.0
    %250 = vmatpush2.msra.mxu0 0.0
    %251 = vmatprep.mubr.f32.mxu0 0.0
    %252 = vmatmul.mubr.f32.gmra.mxu0 %v160
    %v253 = vpop.f32.mrf.mxu0
    %v254 = vadd.f32 %v185, %v253
    %v255 = vpop.f32.mrf.mxu0
    %256 = vmatprep.mubr.f32.mxu0 0.0
    %257 = vmatmul.mubr.f32.gmra.mxu0 %v161
    %v258 = vpop.f32.mrf.mxu0
    %v259 = vadd.f32 %v185, %v258
    %v260 = vpop.f32.mrf.mxu0
    %261 = vdwg.mxu0
    %262 = vst [vmem:[#allocation8] sm:$0xff] %v254
    %263 = vst [vmem:[#allocation8 + $0x8] sm:$0xff] %v259
    // Predicated region
    $region34: #{tpu_custom_call.1} parent=1 // pred_check
      _
    $region35: #{tpu_custom_call.1} parent=1 // pred_check_branch
      %265 = sbr.rel (0) target = $region37
    $region36: #{tpu_custom_call.1} parent=1 // pred_region
      %s267 = ssub.s32 256, 256
      %268 = vsyncadd [#allocation4], %s267
      %s269 = sshll.u32 [#allocation8], 4
      %s270 = int_to_ptr.vmem [resolvable:$true] %s269
      %275 = dma.vmem_to_hbm [thread:$0]  %s270, 256, %s5, [#allocation4], 128, 128, 8
    $region37: #{tpu_custom_call.1} parent=1 // pred_fallthru
      _
    // Predicated region
    $region38: #{tpu_custom_call.1} parent=1 // pred_check
      _
    $region39: #{tpu_custom_call.1} parent=1 // pred_check_branch
      %277 = sbr.rel (0) target = $region41
    $region40: #{tpu_custom_call.1} parent=1 // pred_region
      %s279 = ssub.s32 256, 256
      %280 = vsyncadd [#allocation10], %s279
      %s281 = sshll.u32 [#allocation9], 4
      %s282 = int_to_ptr.vmem [resolvable:$true] %s281
      %287 = dma.vmem_to_hbm [thread:$0]  %s282, 256, %s6, [#allocation10], 128, 128, 8
    $region41: #{tpu_custom_call.1} parent=1 // pred_fallthru
      _
    // Predicated region
    $region42: #{tpu_custom_call.1} parent=1 // pred_check
      _
    $region43: #{tpu_custom_call.1} parent=1 // pred_check_branch
      %289 = sbr.rel (0) target = $region45
    $region44: #{tpu_custom_call.1} parent=1 // pred_region
      %290 = dma.done [#allocation4], 256
    $region45: #{tpu_custom_call.1} parent=1 // pred_fallthru
      _
    // Predicated region
    $region46: #{tpu_custom_call.1} parent=1 // pred_check
      _
    $region47: #{tpu_custom_call.1} parent=1 // pred_check_branch
      %292 = sbr.rel (0) target = $region49
    $region48: #{tpu_custom_call.1} parent=1 // pred_region
      %293 = dma.done [#allocation10], 256
    $region49: #{tpu_custom_call.1} parent=1 // pred_fallthru
      _
    %294 = vsyncpa [#allocation3], 1
    %295 = vsyncpa [#allocation6], 1
    %296 = vsyncpa [#allocation4], 1
    %297 = vsyncpa [#allocation10], 1

</llo_original>
